<compile_context>
chip_gen: v6e
topology: v6e:2x2x1
jax: 0.10.0
libtpu: 0.0.40
codegen_flags: <defaults>
</compile_context>

<pallas_src>
import functools

import jax
import jax.numpy as jnp
from jax.experimental import pallas as pl
from jax.experimental.pallas import tpu as pltpu

LANE = 128
SUBLANE = 8


def _round_up(x, m):
    return ((x + m - 1) // m) * m


def _pad2d(a, rows, cols):
    r, c = a.shape
    return jnp.pad(a, ((0, rows - r), (0, cols - c)))


def _tpu_vmem_capacity_bytes():
    """Physical per-core VMEM (128 MiB v5e/v6e, 64 MiB v7x). Conservative
    64 MiB fallback if the query is unavailable (e.g. interpret mode)."""
    try:
        cap = int(getattr(pltpu.get_tpu_info(), "vmem_capacity_bytes", 0))
        if cap > 0:
            return cap
    except Exception:
        pass
    return 64 * 1024 * 1024


def _make_scalenet_kernel(fold):
    """Kernel factory. `fold` is a static Python bool:
      fold=True : refs = (w12, fc1_w, fc1_b, fc2_w, fc2_b, fc3_w, fc3_b, out)
      fold=False: refs = (w1, w2, fc1_w, fc1_b, fc2_w, fc2_b, fc3_w, fc3_b, out)
    """
    def scalenet_kernel(mp_ref, x_ref, *refs):
        if fold:
            (w12_ref, fc1_w_ref, fc1_b_ref, fc2_w_ref, fc2_b_ref,
             fc3_w_ref, fc3_b_ref, o_ref) = refs
            # mp @ (weight1 @ weight2), W12 folded in the wrapper.
            mp = jnp.dot(mp_ref[...], w12_ref[...],
                         preferred_element_type=jnp.float32)
        else:
            (w1_ref, w2_ref, fc1_w_ref, fc1_b_ref, fc2_w_ref, fc2_b_ref,
             fc3_w_ref, fc3_b_ref, o_ref) = refs
            # Low-rank scaling: keep the two matmuls (cheaper on the MXU).
            t = jnp.dot(mp_ref[...], w1_ref[...],
                        preferred_element_type=jnp.float32)
            mp = jnp.dot(t.astype(jnp.bfloat16), w2_ref[...],
                         preferred_element_type=jnp.float32)

        # x = x * mp  (f32 elementwise; safe on all generations incl. v5e)
        h = x_ref[...].astype(jnp.float32) * mp

        # fc1 + relu
        h = jnp.dot(h.astype(jnp.bfloat16), fc1_w_ref[...],
                    preferred_element_type=jnp.float32) + fc1_b_ref[...]
        h = jnp.maximum(h, 0.0)

        # fc2 + relu
        h = jnp.dot(h.astype(jnp.bfloat16), fc2_w_ref[...],
                    preferred_element_type=jnp.float32) + fc2_b_ref[...]
        h = jnp.maximum(h, 0.0)

        # fc3 (no activation)
        out = jnp.dot(h.astype(jnp.bfloat16), fc3_w_ref[...],
                      preferred_element_type=jnp.float32) + fc3_b_ref[...]
        o_ref[...] = out.astype(o_ref.dtype)

    return scalenet_kernel


def scalenet_forward(mp, x, params, *, tile_n=None, out_dtype=jnp.float32):
    """Fused ScaleNet forward.

    Activations are batch-tiled over a 1-D grid; padded weights/biases stay
    VMEM-resident (constant index_map, single-buffered). Feature dims are
    zero-padded to 128 lanes and the (n, n_class) result is sliced back out.
    """
    n, fd = x.shape
    fd2 = mp.shape[1]
    ld = params["weight1"].shape[1]
    num_hidden = params["fc1_w"].shape[1]
    n_class = params["fc3_w"].shape[1]

    # Lane-padded feature dims.
    FP2 = _round_up(fd2, LANE)
    FP = _round_up(fd, LANE)
    LDP = _round_up(ld, LANE)
    HP = _round_up(num_hidden, LANE)
    CP = _round_up(n_class, LANE)

    # Fold weight1@weight2 only when it does not inflate MXU work / VMEM:
    # folded first matmul costs FP2*FP per row with an (FP2, FP) resident W12;
    # unfolded costs FP2*LDP + LDP*FP. Folding wins iff LDP >= FP.
    fold = LDP >= FP

    bf = jnp.bfloat16
    out_itemsize = jnp.dtype(out_dtype).itemsize

    # --- resident (weight / bias) operands ----------------------------------
    if fold:
        w12 = jnp.dot(params["weight1"], params["weight2"],
                      preferred_element_type=jnp.float32)
        weight_ops = [_pad2d(w12, FP2, FP).astype(bf)]
        weight_shapes = [(FP2, FP)]
    else:
        weight_ops = [_pad2d(params["weight1"], FP2, LDP).astype(bf),
                      _pad2d(params["weight2"], LDP, FP).astype(bf)]
        weight_shapes = [(FP2, LDP), (LDP, FP)]

    weight_ops += [
        _pad2d(params["fc1_w"], FP, HP).astype(bf),
        _pad2d(params["fc1_b"], 1, HP),              # biases stay f32
        _pad2d(params["fc2_w"], HP, HP).astype(bf),
        _pad2d(params["fc2_b"], 1, HP),
        _pad2d(params["fc3_w"], HP, CP).astype(bf),
        _pad2d(params["fc3_b"], 1, CP),
    ]
    weight_shapes += [(FP, HP), (1, HP), (HP, HP), (1, HP), (HP, CP), (1, CP)]

    resident_bytes = sum(int(a.size) * a.dtype.itemsize for a in weight_ops)

    # --- VMEM budget & batch-tile selection ----------------------------------
    vmem_cap = _tpu_vmem_capacity_bytes()
    vmem_limit = int(vmem_cap * 3 // 4)   # ~25% headroom for compiler scratch

    # Per batch-row VMEM: double-buffered bf16 activation streams + the f32
    # intermediates / bf16 casts the compiler keeps live inside the body.
    per_row = (2 * (FP2 + FP) * 2                         # mp/x tiles, 2 bufs
               + 2 * CP * out_itemsize                    # out tile, 2 bufs
               + (FP2 + 2 * FP + 2 * HP + CP
                  + (0 if fold else LDP)) * 4             # f32 intermediates
               + (FP + 2 * HP) * 2)                       # bf16 MXU feeds

    if tile_n is None:
        # Big tiles on 128 MiB chips (v5e/v6e); more modest start on v7x.
        tile_n = 1024 if vmem_cap > (64 << 20) else 512
    tn = max(SUBLANE, min(_round_up(tile_n, SUBLANE), _round_up(n, SUBLANE)))
    while tn > SUBLANE and resident_bytes + tn * per_row > vmem_limit:
        tn = max(SUBLANE, _round_up(tn // 2, SUBLANE))

    # v7x (64 MiB VMEM signature) has 2 TensorCores: make sure the "parallel"
    # grid has at least 2 steps when the batch allows it.
    if vmem_cap <= (64 << 20):
        while tn > SUBLANE and _round_up(n, tn) // tn < 2 and n > SUBLANE:
            tn = max(SUBLANE, _round_up((tn + 1) // 2, SUBLANE))

    NP = _round_up(n, tn)
    grid = (NP // tn,)

    mp_p = _pad2d(mp, NP, FP2).astype(bf)
    x_p = _pad2d(x, NP, FP).astype(bf)

    def act(shape):         # batch-tiled activation / output blocks
        return pl.BlockSpec(shape, lambda i: (i, 0))

    def resident(shape):    # same block every step; single VMEM buffer
        try:
            return pl.BlockSpec(shape, lambda i: (0, 0),
                                pipeline_mode=pl.Buffered(1))
        except TypeError:   # older BlockSpec without pipeline_mode
            return pl.BlockSpec(shape, lambda i: (0, 0))

    in_specs = [act((tn, FP2)), act((tn, FP))]
    in_specs += [resident(s) for s in weight_shapes]

    operands = (mp_p, x_p, *weight_ops)

    first_flops = FP2 * FP if fold else (FP2 * LDP + LDP * FP)
    flops = 2 * NP * (first_flops + FP * HP + HP * HP + HP * CP) + NP * FP
    bytes_accessed = sum(int(a.size) * a.dtype.itemsize for a in operands)
    bytes_accessed += NP * CP * out_itemsize

    out_p = pl.pallas_call(
        _make_scalenet_kernel(fold),
        out_shape=jax.ShapeDtypeStruct((NP, CP), out_dtype),
        grid=grid,
        in_specs=in_specs,
        out_specs=act((tn, CP)),
        compiler_params=pltpu.CompilerParams(
            dimension_semantics=("parallel",),
            vmem_limit_bytes=vmem_limit,
        ),
        cost_estimate=pl.CostEstimate(
            flops=flops, transcendentals=0, bytes_accessed=bytes_accessed),
    )(*operands)

    return out_p[:n, :n_class]


def init_params(key, fd, n_class, ld, num_hidden):
    """Deterministic parameter init mirroring the PyTorch module's shapes.
    weight1/weight2 ~ U(-0.1, 0.1); Linear layers ~ U(-1/sqrt(fan_in), +).
    fc weights are stored as (in, out) = transpose of PyTorch's (out, in)."""
    ks = jax.random.split(key, 8)

    def u(k, shape, bound):
        return jax.random.uniform(k, shape, jnp.float32, -bound, bound)

    return {
        "weight1": u(ks[0], (fd * 2, ld), 0.1),
        "weight2": u(ks[1], (ld, fd), 0.1),
        "fc1_w": u(ks[2], (fd, num_hidden), 1.0 / (fd ** 0.5)),
        "fc1_b": u(ks[3], (1, num_hidden), 1.0 / (fd ** 0.5)),
        "fc2_w": u(ks[4], (num_hidden, num_hidden), 1.0 / (num_hidden ** 0.5)),
        "fc2_b": u(ks[5], (1, num_hidden), 1.0 / (num_hidden ** 0.5)),
        "fc3_w": u(ks[6], (num_hidden, n_class), 1.0 / (num_hidden ** 0.5)),
        "fc3_b": u(ks[7], (1, n_class), 1.0 / (num_hidden ** 0.5)),
    }


def scalenet_reference_f32(mp, x, p):
    """Pure-f32 JAX reference of the original PyTorch forward."""
    mp = mp @ p["weight1"]
    mp = mp @ p["weight2"]
    h = x * mp
    h = jax.nn.relu(h @ p["fc1_w"] + p["fc1_b"])
    h = jax.nn.relu(h @ p["fc2_w"] + p["fc2_b"])
    return h @ p["fc3_w"] + p["fc3_b"]


def scalenet_reference_bf16(mp, x, p):
    """Reference mirroring the kernel's dtype plumbing exactly (bf16 matmul
    operands, f32 accumulation/elementwise), including the conditional fold."""
    bf = jnp.bfloat16
    fd = p["fc1_w"].shape[0]
    ld = p["weight1"].shape[1]
    if _round_up(ld, LANE) >= _round_up(fd, LANE):       # folded W12 path
        w12 = jnp.dot(p["weight1"], p["weight2"],
                      preferred_element_type=jnp.float32).astype(bf)
        mp32 = jnp.dot(mp.astype(bf), w12, preferred_element_type=jnp.float32)
    else:                                                # two in-kernel matmuls
        t = jnp.dot(mp.astype(bf), p["weight1"].astype(bf),
                    preferred_element_type=jnp.float32)
        mp32 = jnp.dot(t.astype(bf), p["weight2"].astype(bf),
                       preferred_element_type=jnp.float32)
    h = x.astype(bf).astype(jnp.float32) * mp32
    h = jnp.maximum(jnp.dot(h.astype(bf), p["fc1_w"].astype(bf),
                            preferred_element_type=jnp.float32) + p["fc1_b"], 0.0)
    h = jnp.maximum(jnp.dot(h.astype(bf), p["fc2_w"].astype(bf),
                            preferred_element_type=jnp.float32) + p["fc2_b"], 0.0)
    return jnp.dot(h.astype(bf), p["fc3_w"].astype(bf),
                   preferred_element_type=jnp.float32) + p["fc3_b"]


if __name__ == "__main__":
    def run_case(N, fd, ld, num_hidden, n_class):
        key = jax.random.PRNGKey(0)
        k_mp, k_x, k_p = jax.random.split(key, 3)
        mp_in = jax.random.normal(k_mp, (N, fd * 2), jnp.float32)
        x_in = jax.random.normal(k_x, (N, fd), jnp.float32)
        params = init_params(k_p, fd, n_class, ld, num_hidden)

        out = jax.block_until_ready(
            jax.jit(scalenet_forward)(mp_in, x_in, params))
        assert out.shape == (N, n_class)

        # Tight check against a reference with identical bf16/f32 plumbing.
        ref_bf16 = scalenet_reference_bf16(mp_in, x_in, params)
        assert jnp.allclose(out, ref_bf16, atol=1e-2, rtol=1e-2), \
            "mismatch vs bf16-mirrored JAX reference"

        # Loose sanity check against the original all-f32 math.
        ref_f32 = scalenet_reference_f32(mp_in, x_in, params)
        assert jnp.allclose(out, ref_f32, atol=5e-2, rtol=5e-2), \
            "mismatch vs f32 JAX reference"

    # Case 1: padded ld >= padded fd -> folded-W12 path.
    run_case(N=8, fd=16, ld=32, num_hidden=32, n_class=4)
    # Case 2: low-rank scaling (padded ld < padded fd) -> two in-kernel matmuls.
    run_case(N=16, fd=200, ld=32, num_hidden=48, n_class=10)

    print("KERNEL_OK")
</pallas_src>

<mosaic_0001>
module attributes {stable_mosaic.version = 11 : i64} {
  func.func @scalenet_kernel(%arg0: i32, %arg1: memref<8x128xbf16, #tpu.memory_space<vmem>>, %arg2: memref<8x128xbf16, #tpu.memory_space<vmem>>, %arg3: memref<128x128xbf16, #tpu.memory_space<vmem>>, %arg4: memref<128x128xbf16, #tpu.memory_space<vmem>>, %arg5: memref<1x128xf32, #tpu.memory_space<vmem>>, %arg6: memref<128x128xbf16, #tpu.memory_space<vmem>>, %arg7: memref<1x128xf32, #tpu.memory_space<vmem>>, %arg8: memref<128x128xbf16, #tpu.memory_space<vmem>>, %arg9: memref<1x128xf32, #tpu.memory_space<vmem>>, %arg10: memref<8x128xf32, #tpu.memory_space<vmem>>) attributes {dimension_semantics = [#tpu.dimension_semantics<parallel>], iteration_bounds = array<i64: 1>, scalar_prefetch = 0 : i64, scratch_operands = 0 : i64, tpu.core_type = #tpu.core_type<tc>, window_params = [{transform_indices = @transform_0, window_bounds = array<i64: 8, 128>}, {transform_indices = @transform_1, window_bounds = array<i64: 8, 128>}, {pipeline_mode = #tpu.pipeline_mode<synchronous>, transform_indices = @transform_2, window_bounds = array<i64: 128, 128>}, {pipeline_mode = #tpu.pipeline_mode<synchronous>, transform_indices = @transform_3, window_bounds = array<i64: 128, 128>}, {pipeline_mode = #tpu.pipeline_mode<synchronous>, transform_indices = @transform_4, window_bounds = array<i64: 1, 128>}, {pipeline_mode = #tpu.pipeline_mode<synchronous>, transform_indices = @transform_5, window_bounds = array<i64: 128, 128>}, {pipeline_mode = #tpu.pipeline_mode<synchronous>, transform_indices = @transform_6, window_bounds = array<i64: 1, 128>}, {pipeline_mode = #tpu.pipeline_mode<synchronous>, transform_indices = @transform_7, window_bounds = array<i64: 128, 128>}, {pipeline_mode = #tpu.pipeline_mode<synchronous>, transform_indices = @transform_8, window_bounds = array<i64: 1, 128>}, {transform_indices = @transform_9, window_bounds = array<i64: 8, 128>}]} {
    %c0 = arith.constant 0 : index
    %c0_0 = arith.constant 0 : index
    %0 = vector.load %arg1[%c0, %c0_0] : memref<8x128xbf16, #tpu.memory_space<vmem>>, vector<8x128xbf16>
    %c0_1 = arith.constant 0 : index
    %c0_2 = arith.constant 0 : index
    %1 = vector.load %arg3[%c0_1, %c0_2] : memref<128x128xbf16, #tpu.memory_space<vmem>>, vector<128x128xbf16>
    %cst = arith.constant dense<0.000000e+00> : vector<8x128xf32>
    %2 = tpu.matmul %0, %1, %cst {dimension_numbers = #tpu.dot_dimension_numbers<[1], [0], [0], [1], [0, 0, 1, 1], [], []>} : vector<8x128xbf16>, vector<128x128xbf16>, vector<8x128xf32> -> vector<8x128xf32>
    %c0_3 = arith.constant 0 : index
    %c0_4 = arith.constant 0 : index
    %3 = vector.load %arg2[%c0_3, %c0_4] : memref<8x128xbf16, #tpu.memory_space<vmem>>, vector<8x128xbf16>
    %4 = arith.extf %3 : vector<8x128xbf16> to vector<8x128xf32>
    %5 = arith.mulf %4, %2 : vector<8x128xf32>
    %6 = arith.truncf %5 : vector<8x128xf32> to vector<8x128xbf16>
    %c0_5 = arith.constant 0 : index
    %c0_6 = arith.constant 0 : index
    %7 = vector.load %arg4[%c0_5, %c0_6] : memref<128x128xbf16, #tpu.memory_space<vmem>>, vector<128x128xbf16>
    %cst_7 = arith.constant dense<0.000000e+00> : vector<8x128xf32>
    %8 = tpu.matmul %6, %7, %cst_7 {dimension_numbers = #tpu.dot_dimension_numbers<[1], [0], [0], [1], [0, 0, 1, 1], [], []>} : vector<8x128xbf16>, vector<128x128xbf16>, vector<8x128xf32> -> vector<8x128xf32>
    %c0_8 = arith.constant 0 : index
    %c0_9 = arith.constant 0 : index
    %9 = vector.load %arg5[%c0_8, %c0_9] : memref<1x128xf32, #tpu.memory_space<vmem>>, vector<1x128xf32>
    %10 = vector.broadcast %9 : vector<1x128xf32> to vector<8x128xf32>
    %11 = arith.addf %8, %10 : vector<8x128xf32>
    %cst_10 = arith.constant 0.000000e+00 : f32
    %12 = vector.broadcast %cst_10 : f32 to vector<8x128xf32>
    %13 = arith.maximumf %11, %12 : vector<8x128xf32>
    %14 = arith.truncf %13 : vector<8x128xf32> to vector<8x128xbf16>
    %c0_11 = arith.constant 0 : index
    %c0_12 = arith.constant 0 : index
    %15 = vector.load %arg6[%c0_11, %c0_12] : memref<128x128xbf16, #tpu.memory_space<vmem>>, vector<128x128xbf16>
    %cst_13 = arith.constant dense<0.000000e+00> : vector<8x128xf32>
    %16 = tpu.matmul %14, %15, %cst_13 {dimension_numbers = #tpu.dot_dimension_numbers<[1], [0], [0], [1], [0, 0, 1, 1], [], []>} : vector<8x128xbf16>, vector<128x128xbf16>, vector<8x128xf32> -> vector<8x128xf32>
    %c0_14 = arith.constant 0 : index
    %c0_15 = arith.constant 0 : index
    %17 = vector.load %arg7[%c0_14, %c0_15] : memref<1x128xf32, #tpu.memory_space<vmem>>, vector<1x128xf32>
    %18 = vector.broadcast %17 : vector<1x128xf32> to vector<8x128xf32>
    %19 = arith.addf %16, %18 : vector<8x128xf32>
    %cst_16 = arith.constant 0.000000e+00 : f32
    %20 = vector.broadcast %cst_16 : f32 to vector<8x128xf32>
    %21 = arith.maximumf %19, %20 : vector<8x128xf32>
    %22 = arith.truncf %21 : vector<8x128xf32> to vector<8x128xbf16>
    %c0_17 = arith.constant 0 : index
    %c0_18 = arith.constant 0 : index
    %23 = vector.load %arg8[%c0_17, %c0_18] : memref<128x128xbf16, #tpu.memory_space<vmem>>, vector<128x128xbf16>
    %cst_19 = arith.constant dense<0.000000e+00> : vector<8x128xf32>
    %24 = tpu.matmul %22, %23, %cst_19 {dimension_numbers = #tpu.dot_dimension_numbers<[1], [0], [0], [1], [0, 0, 1, 1], [], []>} : vector<8x128xbf16>, vector<128x128xbf16>, vector<8x128xf32> -> vector<8x128xf32>
    %c0_20 = arith.constant 0 : index
    %c0_21 = arith.constant 0 : index
    %25 = vector.load %arg9[%c0_20, %c0_21] : memref<1x128xf32, #tpu.memory_space<vmem>>, vector<1x128xf32>
    %26 = vector.broadcast %25 : vector<1x128xf32> to vector<8x128xf32>
    %27 = arith.addf %24, %26 : vector<8x128xf32>
    %c0_22 = arith.constant 0 : index
    %c0_23 = arith.constant 0 : index
    %28 = vector.load %arg10[%c0_22, %c0_23] : memref<8x128xf32, #tpu.memory_space<vmem>>, vector<8x128xf32>
    tpu.vector_store %arg10[%c0_22, %c0_23], %27 {strides = array<i32>} : memref<8x128xf32, #tpu.memory_space<vmem>>, vector<8x128xf32>,
    return
  }
  func.func @transform_0(%arg0: i32) -> (i32, i32) {
    %c0_i32 = arith.constant 0 : i32
    %c0_i32_0 = arith.constant 0 : i32
    return %arg0, %c0_i32 : i32, i32
  }
  func.func @transform_1(%arg0: i32) -> (i32, i32) {
    %c0_i32 = arith.constant 0 : i32
    %c0_i32_0 = arith.constant 0 : i32
    return %arg0, %c0_i32 : i32, i32
  }
  func.func @transform_2(%arg0: i32) -> (i32, i32) {
    %c0_i32 = arith.constant 0 : i32
    %c0_i32_0 = arith.constant 0 : i32
    %c0_i32_1 = arith.constant 0 : i32
    return %c0_i32, %c0_i32_0 : i32, i32
  }
  func.func @transform_3(%arg0: i32) -> (i32, i32) {
    %c0_i32 = arith.constant 0 : i32
    %c0_i32_0 = arith.constant 0 : i32
    %c0_i32_1 = arith.constant 0 : i32
    return %c0_i32, %c0_i32_0 : i32, i32
  }
  func.func @transform_4(%arg0: i32) -> (i32, i32) {
    %c0_i32 = arith.constant 0 : i32
    %c0_i32_0 = arith.constant 0 : i32
    %c0_i32_1 = arith.constant 0 : i32
    return %c0_i32, %c0_i32_0 : i32, i32
  }
  func.func @transform_5(%arg0: i32) -> (i32, i32) {
    %c0_i32 = arith.constant 0 : i32
    %c0_i32_0 = arith.constant 0 : i32
    %c0_i32_1 = arith.constant 0 : i32
    return %c0_i32, %c0_i32_0 : i32, i32
  }
  func.func @transform_6(%arg0: i32) -> (i32, i32) {
    %c0_i32 = arith.constant 0 : i32
    %c0_i32_0 = arith.constant 0 : i32
    %c0_i32_1 = arith.constant 0 : i32
    return %c0_i32, %c0_i32_0 : i32, i32
  }
  func.func @transform_7(%arg0: i32) -> (i32, i32) {
    %c0_i32 = arith.constant 0 : i32
    %c0_i32_0 = arith.constant 0 : i32
    %c0_i32_1 = arith.constant 0 : i32
    return %c0_i32, %c0_i32_0 : i32, i32
  }
  func.func @transform_8(%arg0: i32) -> (i32, i32) {
    %c0_i32 = arith.constant 0 : i32
    %c0_i32_0 = arith.constant 0 : i32
    %c0_i32_1 = arith.constant 0 : i32
    return %c0_i32, %c0_i32_0 : i32, i32
  }
  func.func @transform_9(%arg0: i32) -> (i32, i32) {
    %c0_i32 = arith.constant 0 : i32
    %c0_i32_0 = arith.constant 0 : i32
    return %arg0, %c0_i32 : i32, i32
  }
}

</mosaic_0001>

<llo_original>
// kernel: scalenet_forward.1
$region0: #{scalenet_forward.1}
  #allocation0 [shape = 'u32[]', space=smem, size = 0x4, offset = 0x4, fixed_abs, tag = 'smem constant byte address 0x4 - core index']
  #allocation1 [shape = 'u32[144,128]{1,0:T(1,128)}', space=vmem, size = 0x12000, scoped, tag = 'internal scratch']
  %s0 = inlined_call_operand.vmem [shape: bf16[8,128], index: 0, kind: input, shape index: {}]
  %s1 = inlined_call_operand.vmem [shape: bf16[8,128], index: 1, kind: input, shape index: {}]
  %s2 = inlined_call_operand.vmem [shape: bf16[128,128], index: 2, kind: input, shape index: {}]
  %s3 = inlined_call_operand.vmem [shape: bf16[128,128], index: 3, kind: input, shape index: {}]
  %s4 = inlined_call_operand.vmem [shape: f32[1,128], index: 4, kind: input, shape index: {}]
  %s5 = inlined_call_operand.vmem [shape: bf16[128,128], index: 5, kind: input, shape index: {}]
  %s6 = inlined_call_operand.vmem [shape: f32[1,128], index: 6, kind: input, shape index: {}]
  %s7 = inlined_call_operand.vmem [shape: bf16[128,128], index: 7, kind: input, shape index: {}]
  %s8 = inlined_call_operand.vmem [shape: f32[1,128], index: 8, kind: input, shape index: {}]
  %s9 = inlined_call_operand.vmem [shape: f32[8,128], index: 9, kind: output, shape index: {}]
  %s10 = sld [smem:[#allocation0]]
  $region46: #{scalenet_forward.1} parent=0
    _
  %s12 = ssub.s32 1, %s10
  %s13 = scalar_select 0, %s12, %s10
  // Predicated region
  $region2: #{scalenet_forward.1} parent=0 // pred_check
    _
  $region3: #{scalenet_forward.1} parent=0 // pred_check_branch
    %15 = sbr.rel (0) target = $region5
  $region4: #{scalenet_forward.1} parent=0 // pred_region
    _
  $region5: #{scalenet_forward.1} parent=0 // pred_fallthru
    _
  // Predicated region
  $region6: #{scalenet_forward.1} parent=0 // pred_check
    _
  $region7: #{scalenet_forward.1} parent=0 // pred_check_branch
    %17 = sbr.rel (0) target = $region9
  $region8: #{scalenet_forward.1} parent=0 // pred_region
    _
  $region9: #{scalenet_forward.1} parent=0 // pred_fallthru
    _
  // Predicated region
  $region10: #{scalenet_forward.1} parent=0 // pred_check
    _
  $region11: #{scalenet_forward.1} parent=0 // pred_check_branch
    %19 = sbr.rel (0) target = $region13
  $region12: #{scalenet_forward.1} parent=0 // pred_region
    _
  $region13: #{scalenet_forward.1} parent=0 // pred_fallthru
    _
  // Predicated region
  $region14: #{scalenet_forward.1} parent=0 // pred_check
    _
  $region15: #{scalenet_forward.1} parent=0 // pred_check_branch
    %21 = sbr.rel (0) target = $region17
  $region16: #{scalenet_forward.1} parent=0 // pred_region
    _
  $region17: #{scalenet_forward.1} parent=0 // pred_fallthru
    _
  // Predicated region
  $region18: #{scalenet_forward.1} parent=0 // pred_check
    _
  $region19: #{scalenet_forward.1} parent=0 // pred_check_branch
    %23 = sbr.rel (0) target = $region21
  $region20: #{scalenet_forward.1} parent=0 // pred_region
    _
  $region21: #{scalenet_forward.1} parent=0 // pred_fallthru
    _
  // Predicated region
  $region22: #{scalenet_forward.1} parent=0 // pred_check
    _
  $region23: #{scalenet_forward.1} parent=0 // pred_check_branch
    %25 = sbr.rel (0) target = $region25
  $region24: #{scalenet_forward.1} parent=0 // pred_region
    _
  $region25: #{scalenet_forward.1} parent=0 // pred_fallthru
    _
  // Predicated region
  $region26: #{scalenet_forward.1} parent=0 // pred_check
    _
  $region27: #{scalenet_forward.1} parent=0 // pred_check_branch
    %27 = sbr.rel (0) target = $region29
  $region28: #{scalenet_forward.1} parent=0 // pred_region
    _
  $region29: #{scalenet_forward.1} parent=0 // pred_fallthru
    _
  // Predicated region
  $region30: #{scalenet_forward.1} parent=0 // pred_check
    _
  $region31: #{scalenet_forward.1} parent=0 // pred_check_branch
    %29 = sbr.rel (0) target = $region33
  $region32: #{scalenet_forward.1} parent=0 // pred_region
    _
  $region33: #{scalenet_forward.1} parent=0 // pred_fallthru
    _
  // Predicated region
  $region34: #{scalenet_forward.1} parent=0 // pred_check
    _
  $region35: #{scalenet_forward.1} parent=0 // pred_check_branch
    %31 = sbr.rel (0) target = $region37
  $region36: #{scalenet_forward.1} parent=0 // pred_region
    _
  $region37: #{scalenet_forward.1} parent=0 // pred_fallthru
    _
  %v33 = vld [vmem:[%s0] sm:$0xf]
  %v34 = vld [vmem:[%s2] sm:$0xf]
  %v35 = vld [vmem:[%s2 + $0x4] sm:$0xf]
  %v36 = vld [vmem:[%s2 + $0x8] sm:$0xf]
  %v37 = vld [vmem:[%s2 + $0xc] sm:$0xf]
  %v38 = vld [vmem:[%s2 + $0x10] sm:$0xf]
  %v39 = vld [vmem:[%s2 + $0x14] sm:$0xf]
  %v40 = vld [vmem:[%s2 + $0x18] sm:$0xf]
  %v41 = vld [vmem:[%s2 + $0x1c] sm:$0xf]
  %v42 = vld [vmem:[%s2 + $0x20] sm:$0xf]
  %v43 = vld [vmem:[%s2 + $0x24] sm:$0xf]
  %v44 = vld [vmem:[%s2 + $0x28] sm:$0xf]
  %v45 = vld [vmem:[%s2 + $0x2c] sm:$0xf]
  %v46 = vld [vmem:[%s2 + $0x30] sm:$0xf]
  %v47 = vld [vmem:[%s2 + $0x34] sm:$0xf]
  %v48 = vld [vmem:[%s2 + $0x38] sm:$0xf]
  %v49 = vld [vmem:[%s2 + $0x3c] sm:$0xf]
  %v66 = vunpack.c.l.b16 %v34
  %v67 = vunpack.c.l.b16 %v35
  %v68 = vunpack.c.l.b16 %v36
  %v69 = vunpack.c.l.b16 %v37
  %v70 = vunpack.c.l.b16 %v38
  %v71 = vunpack.c.l.b16 %v39
  %v72 = vunpack.c.l.b16 %v40
  %v73 = vunpack.c.l.b16 %v41
  %v74 = vunpack.c.l.b16 %v42
  %v75 = vunpack.c.l.b16 %v43
  %v76 = vunpack.c.l.b16 %v44
  %v77 = vunpack.c.l.b16 %v45
  %v78 = vunpack.c.l.b16 %v46
  %v79 = vunpack.c.l.b16 %v47
  %v80 = vunpack.c.l.b16 %v48
  %v81 = vunpack.c.l.b16 %v49
  %v82 = vpack.c.b16 %v67, %v66
  %v83 = vpack.c.b16 %v69, %v68
  %v84 = vpack.c.b16 %v71, %v70
  %v85 = vpack.c.b16 %v73, %v72
  %v86 = vpack.c.b16 %v75, %v74
  %v87 = vpack.c.b16 %v77, %v76
  %v88 = vpack.c.b16 %v79, %v78
  %v89 = vpack.c.b16 %v81, %v80
  %98 = vmatprep.subr.bf16.mxu0 0
  %99 = vmatpush1.bf16.msra.mxu0 %v89
  %100 = vmatprep.subr.bf16.mxu0 0
  %101 = vmatpush1.bf16.msra.mxu0 %v88
  %102 = vmatprep.subr.bf16.mxu0 0
  %103 = vmatpush1.bf16.msra.mxu0 %v87
  %104 = vmatprep.subr.bf16.mxu0 0
  %105 = vmatpush1.bf16.msra.mxu0 %v86
  %106 = vmatprep.subr.bf16.mxu0 0
  %107 = vmatpush1.bf16.msra.mxu0 %v85
  %108 = vmatprep.subr.bf16.mxu0 0
  %109 = vmatpush1.bf16.msra.mxu0 %v84
  %110 = vmatprep.subr.bf16.mxu0 0
  %111 = vmatpush1.bf16.msra.mxu0 %v83
  %112 = vmatprep.subr.bf16.mxu0 0
  %113 = vmatpush1.bf16.msra.mxu0 %v82
  %114 = vmatprep.subr.bf16.mxu0 0
  %115 = vmatpush2.bf16.msra.mxu0 0
  %116 = vmatprep.subr.bf16.mxu0 0
  %117 = vmatpush2.bf16.msra.mxu0 0
  %118 = vmatprep.subr.bf16.mxu0 0
  %119 = vmatpush2.bf16.msra.mxu0 0
  %120 = vmatprep.subr.bf16.mxu0 0
  %121 = vmatpush2.bf16.msra.mxu0 0
  %122 = vmatprep.subr.bf16.mxu0 0
  %123 = vmatpush2.bf16.msra.mxu0 0
  %124 = vmatprep.subr.bf16.mxu0 0
  %125 = vmatpush2.bf16.msra.mxu0 0
  %126 = vmatprep.subr.bf16.mxu0 0
  %127 = vmatpush2.bf16.msra.mxu0 0
  %128 = vmatprep.subr.bf16.mxu0 0
  %129 = vmatpush2.bf16.msra.mxu0 0
  %130 = vmatprep.mubr.bf16.mxu0 0
  %131 = vmatmul.mubr.bf16.gmra.mxu0 %v33
  %v132 = vpop.f32.mrf.mxu0
  %v133 = vadd.f32 0.0, %v132
  %v134 = vpop.f32.mrf.mxu0
  %v135 = vpop.f32.mrf.mxu0
  %v136 = vpop.f32.mrf.mxu0
  %137 = vdwg.mxu0
  %v138 = vld [vmem:[%s1] sm:$0xf]
  %v139 = vunpack.c.l.bf16 %v138
  %v140 = vmul.f32 %v139, %v133
  %v141 = vpack.c.bf16 %v140, %v140
  %v142 = vld [vmem:[%s3] sm:$0xf]
  %v143 = vld [vmem:[%s3 + $0x4] sm:$0xf]
  %v144 = vld [vmem:[%s3 + $0x8] sm:$0xf]
  %v145 = vld [vmem:[%s3 + $0xc] sm:$0xf]
  %v146 = vld [vmem:[%s3 + $0x10] sm:$0xf]
  %v147 = vld [vmem:[%s3 + $0x14] sm:$0xf]
  %v148 = vld [vmem:[%s3 + $0x18] sm:$0xf]
  %v149 = vld [vmem:[%s3 + $0x1c] sm:$0xf]
  %v150 = vld [vmem:[%s3 + $0x20] sm:$0xf]
  %v151 = vld [vmem:[%s3 + $0x24] sm:$0xf]
  %v152 = vld [vmem:[%s3 + $0x28] sm:$0xf]
  %v153 = vld [vmem:[%s3 + $0x2c] sm:$0xf]
  %v154 = vld [vmem:[%s3 + $0x30] sm:$0xf]
  %v155 = vld [vmem:[%s3 + $0x34] sm:$0xf]
  %v156 = vld [vmem:[%s3 + $0x38] sm:$0xf]
  %v157 = vld [vmem:[%s3 + $0x3c] sm:$0xf]
  %v158 = vld [vmem:[%s4] sm:$0x1]
  %v160 = vlaneseq
  %v161 = vshrl.u32 %v160, 7
  %v162 = vsub.s32 0, %v161
  %v163 = vrot.slane %v158, %v162
  %v181 = vunpack.c.l.b16 %v142
  %v182 = vunpack.c.l.b16 %v143
  %v183 = vunpack.c.l.b16 %v144
  %v184 = vunpack.c.l.b16 %v145
  %v185 = vunpack.c.l.b16 %v146
  %v186 = vunpack.c.l.b16 %v147
  %v187 = vunpack.c.l.b16 %v148
  %v188 = vunpack.c.l.b16 %v149
  %v189 = vunpack.c.l.b16 %v150
  %v190 = vunpack.c.l.b16 %v151
  %v191 = vunpack.c.l.b16 %v152
  %v192 = vunpack.c.l.b16 %v153
  %v193 = vunpack.c.l.b16 %v154
  %v194 = vunpack.c.l.b16 %v155
  %v195 = vunpack.c.l.b16 %v156
  %v196 = vunpack.c.l.b16 %v157
  %v197 = vpack.c.b16 %v182, %v181
  %v198 = vpack.c.b16 %v184, %v183
  %v199 = vpack.c.b16 %v186, %v185
  %v200 = vpack.c.b16 %v188, %v187
  %v201 = vpack.c.b16 %v190, %v189
  %v202 = vpack.c.b16 %v192, %v191
  %v203 = vpack.c.b16 %v194, %v193
  %v204 = vpack.c.b16 %v196, %v195
  %213 = vmatprep.subr.bf16.mxu0 0
  %214 = vmatpush1.bf16.msra.mxu0 %v204
  %215 = vmatprep.subr.bf16.mxu0 0
  %216 = vmatpush1.bf16.msra.mxu0 %v203
  %217 = vmatprep.subr.bf16.mxu0 0
  %218 = vmatpush1.bf16.msra.mxu0 %v202
  %219 = vmatprep.subr.bf16.mxu0 0
  %220 = vmatpush1.bf16.msra.mxu0 %v201
  %221 = vmatprep.subr.bf16.mxu0 0
  %222 = vmatpush1.bf16.msra.mxu0 %v200
  %223 = vmatprep.subr.bf16.mxu0 0
  %224 = vmatpush1.bf16.msra.mxu0 %v199
  %225 = vmatprep.subr.bf16.mxu0 0
  %226 = vmatpush1.bf16.msra.mxu0 %v198
  %227 = vmatprep.subr.bf16.mxu0 0
  %228 = vmatpush1.bf16.msra.mxu0 %v197
  %229 = vmatprep.subr.bf16.mxu0 0
  %230 = vmatpush2.bf16.msra.mxu0 0
  %231 = vmatprep.subr.bf16.mxu0 0
  %232 = vmatpush2.bf16.msra.mxu0 0
  %233 = vmatprep.subr.bf16.mxu0 0
  %234 = vmatpush2.bf16.msra.mxu0 0
  %235 = vmatprep.subr.bf16.mxu0 0
  %236 = vmatpush2.bf16.msra.mxu0 0
  %237 = vmatprep.subr.bf16.mxu0 0
  %238 = vmatpush2.bf16.msra.mxu0 0
  %239 = vmatprep.subr.bf16.mxu0 0
  %240 = vmatpush2.bf16.msra.mxu0 0
  %241 = vmatprep.subr.bf16.mxu0 0
  %242 = vmatpush2.bf16.msra.mxu0 0
  %243 = vmatprep.subr.bf16.mxu0 0
  %244 = vmatpush2.bf16.msra.mxu0 0
  %245 = vmatprep.mubr.bf16.mxu0 0
  %246 = vmatmul.mubr.bf16.gmra.mxu0 %v141
  %v247 = vpop.f32.mrf.mxu0
  %v248 = vadd.f32 %v163, %v247
  %v249 = vpop.f32.mrf.mxu0
  %v250 = vpop.f32.mrf.mxu0
  %v251 = vpop.f32.mrf.mxu0
  %252 = vdwg.mxu0
  %v253 = vmax.f32 %v248, 0.0
  %v254 = vpack.c.bf16 %v253, %v253
  %v255 = vld [vmem:[%s5] sm:$0xf]
  %v256 = vld [vmem:[%s5 + $0x4] sm:$0xf]
  %v257 = vld [vmem:[%s5 + $0x8] sm:$0xf]
  %v258 = vld [vmem:[%s5 + $0xc] sm:$0xf]
  %v259 = vld [vmem:[%s5 + $0x10] sm:$0xf]
  %v260 = vld [vmem:[%s5 + $0x14] sm:$0xf]
  %v261 = vld [vmem:[%s5 + $0x18] sm:$0xf]
  %v262 = vld [vmem:[%s5 + $0x1c] sm:$0xf]
  %v263 = vld [vmem:[%s5 + $0x20] sm:$0xf]
  %v264 = vld [vmem:[%s5 + $0x24] sm:$0xf]
  %v265 = vld [vmem:[%s5 + $0x28] sm:$0xf]
  %v266 = vld [vmem:[%s5 + $0x2c] sm:$0xf]
  %v267 = vld [vmem:[%s5 + $0x30] sm:$0xf]
  %v268 = vld [vmem:[%s5 + $0x34] sm:$0xf]
  %v269 = vld [vmem:[%s5 + $0x38] sm:$0xf]
  %v270 = vld [vmem:[%s5 + $0x3c] sm:$0xf]
  %v271 = vld [vmem:[%s6] sm:$0x1]
  %v273 = vlaneseq
  %v274 = vshrl.u32 %v273, 7
  %v275 = vsub.s32 0, %v274
  %v276 = vrot.slane %v271, %v275
  %v294 = vunpack.c.l.b16 %v255
  %v295 = vunpack.c.l.b16 %v256
  %v296 = vunpack.c.l.b16 %v257
  %v297 = vunpack.c.l.b16 %v258
  %v298 = vunpack.c.l.b16 %v259
  %v299 = vunpack.c.l.b16 %v260
  %v300 = vunpack.c.l.b16 %v261
  %v301 = vunpack.c.l.b16 %v262
  %v302 = vunpack.c.l.b16 %v263
  %v303 = vunpack.c.l.b16 %v264
  %v304 = vunpack.c.l.b16 %v265
  %v305 = vunpack.c.l.b16 %v266
  %v306 = vunpack.c.l.b16 %v267
  %v307 = vunpack.c.l.b16 %v268
  %v308 = vunpack.c.l.b16 %v269
  %v309 = vunpack.c.l.b16 %v270
  %v310 = vpack.c.b16 %v295, %v294
  %v311 = vpack.c.b16 %v297, %v296
  %v312 = vpack.c.b16 %v299, %v298
  %v313 = vpack.c.b16 %v301, %v300
  %v314 = vpack.c.b16 %v303, %v302
  %v315 = vpack.c.b16 %v305, %v304
  %v316 = vpack.c.b16 %v307, %v306
  %v317 = vpack.c.b16 %v309, %v308
  %326 = vmatprep.subr.bf16.mxu0 0
  %327 = vmatpush1.bf16.msra.mxu0 %v317
  %328 = vmatprep.subr.bf16.mxu0 0
  %329 = vmatpush1.bf16.msra.mxu0 %v316
  %330 = vmatprep.subr.bf16.mxu0 0
  %331 = vmatpush1.bf16.msra.mxu0 %v315
  %332 = vmatprep.subr.bf16.mxu0 0
  %333 = vmatpush1.bf16.msra.mxu0 %v314
  %334 = vmatprep.subr.bf16.mxu0 0
  %335 = vmatpush1.bf16.msra.mxu0 %v313
  %336 = vmatprep.subr.bf16.mxu0 0
  %337 = vmatpush1.bf16.msra.mxu0 %v312
  %338 = vmatprep.subr.bf16.mxu0 0
  %339 = vmatpush1.bf16.msra.mxu0 %v311
  %340 = vmatprep.subr.bf16.mxu0 0
  %341 = vmatpush1.bf16.msra.mxu0 %v310
  %342 = vmatprep.subr.bf16.mxu0 0
  %343 = vmatpush2.bf16.msra.mxu0 0
  %344 = vmatprep.subr.bf16.mxu0 0
  %345 = vmatpush2.bf16.msra.mxu0 0
  %346 = vmatprep.subr.bf16.mxu0 0
  %347 = vmatpush2.bf16.msra.mxu0 0
  %348 = vmatprep.subr.bf16.mxu0 0
  %349 = vmatpush2.bf16.msra.mxu0 0
  %350 = vmatprep.subr.bf16.mxu0 0
  %351 = vmatpush2.bf16.msra.mxu0 0
  %352 = vmatprep.subr.bf16.mxu0 0
  %353 = vmatpush2.bf16.msra.mxu0 0
  %354 = vmatprep.subr.bf16.mxu0 0
  %355 = vmatpush2.bf16.msra.mxu0 0
  %356 = vmatprep.subr.bf16.mxu0 0
  %357 = vmatpush2.bf16.msra.mxu0 0
  %358 = vmatprep.mubr.bf16.mxu0 0
  %359 = vmatmul.mubr.bf16.gmra.mxu0 %v254
  %v360 = vpop.f32.mrf.mxu0
  %v361 = vadd.f32 %v276, %v360
  %v362 = vpop.f32.mrf.mxu0
  %v363 = vpop.f32.mrf.mxu0
  %v364 = vpop.f32.mrf.mxu0
  %365 = vdwg.mxu0
  %v366 = vmax.f32 %v361, 0.0
  %v367 = vpack.c.bf16 %v366, %v366
  %v368 = vld [vmem:[%s7] sm:$0xf]
  %v369 = vld [vmem:[%s7 + $0x4] sm:$0xf]
  %v370 = vld [vmem:[%s7 + $0x8] sm:$0xf]
  %v371 = vld [vmem:[%s7 + $0xc] sm:$0xf]
  %v372 = vld [vmem:[%s7 + $0x10] sm:$0xf]
  %v373 = vld [vmem:[%s7 + $0x14] sm:$0xf]
  %v374 = vld [vmem:[%s7 + $0x18] sm:$0xf]
  %v375 = vld [vmem:[%s7 + $0x1c] sm:$0xf]
  %v376 = vld [vmem:[%s7 + $0x20] sm:$0xf]
  %v377 = vld [vmem:[%s7 + $0x24] sm:$0xf]
  %v378 = vld [vmem:[%s7 + $0x28] sm:$0xf]
  %v379 = vld [vmem:[%s7 + $0x2c] sm:$0xf]
  %v380 = vld [vmem:[%s7 + $0x30] sm:$0xf]
  %v381 = vld [vmem:[%s7 + $0x34] sm:$0xf]
  %v382 = vld [vmem:[%s7 + $0x38] sm:$0xf]
  %v383 = vld [vmem:[%s7 + $0x3c] sm:$0xf]
  %v384 = vld [vmem:[%s8] sm:$0x1]
  %v386 = vlaneseq
  %v387 = vshrl.u32 %v386, 7
  %v388 = vsub.s32 0, %v387
  %v389 = vrot.slane %v384, %v388
  %v407 = vunpack.c.l.b16 %v368
  %v408 = vunpack.c.l.b16 %v369
  %v409 = vunpack.c.l.b16 %v370
  %v410 = vunpack.c.l.b16 %v371
  %v411 = vunpack.c.l.b16 %v372
  %v412 = vunpack.c.l.b16 %v373
  %v413 = vunpack.c.l.b16 %v374
  %v414 = vunpack.c.l.b16 %v375
  %v415 = vunpack.c.l.b16 %v376
  %v416 = vunpack.c.l.b16 %v377
  %v417 = vunpack.c.l.b16 %v378
  %v418 = vunpack.c.l.b16 %v379
  %v419 = vunpack.c.l.b16 %v380
  %v420 = vunpack.c.l.b16 %v381
  %v421 = vunpack.c.l.b16 %v382
  %v422 = vunpack.c.l.b16 %v383
  %v423 = vpack.c.b16 %v408, %v407
  %v424 = vpack.c.b16 %v410, %v409
  %v425 = vpack.c.b16 %v412, %v411
  %v426 = vpack.c.b16 %v414, %v413
  %v427 = vpack.c.b16 %v416, %v415
  %v428 = vpack.c.b16 %v418, %v417
  %v429 = vpack.c.b16 %v420, %v419
  %v430 = vpack.c.b16 %v422, %v421
  %439 = vmatprep.subr.bf16.mxu0 0
  %440 = vmatpush1.bf16.msra.mxu0 %v430
  %441 = vmatprep.subr.bf16.mxu0 0
  %442 = vmatpush1.bf16.msra.mxu0 %v429
  %443 = vmatprep.subr.bf16.mxu0 0
  %444 = vmatpush1.bf16.msra.mxu0 %v428
  %445 = vmatprep.subr.bf16.mxu0 0
  %446 = vmatpush1.bf16.msra.mxu0 %v427
  %447 = vmatprep.subr.bf16.mxu0 0
  %448 = vmatpush1.bf16.msra.mxu0 %v426
  %449 = vmatprep.subr.bf16.mxu0 0
  %450 = vmatpush1.bf16.msra.mxu0 %v425
  %451 = vmatprep.subr.bf16.mxu0 0
  %452 = vmatpush1.bf16.msra.mxu0 %v424
  %453 = vmatprep.subr.bf16.mxu0 0
  %454 = vmatpush1.bf16.msra.mxu0 %v423
  %455 = vmatprep.subr.bf16.mxu0 0
  %456 = vmatpush2.bf16.msra.mxu0 0
  %457 = vmatprep.subr.bf16.mxu0 0
  %458 = vmatpush2.bf16.msra.mxu0 0
  %459 = vmatprep.subr.bf16.mxu0 0
  %460 = vmatpush2.bf16.msra.mxu0 0
  %461 = vmatprep.subr.bf16.mxu0 0
  %462 = vmatpush2.bf16.msra.mxu0 0
  %463 = vmatprep.subr.bf16.mxu0 0
  %464 = vmatpush2.bf16.msra.mxu0 0
  %465 = vmatprep.subr.bf16.mxu0 0
  %466 = vmatpush2.bf16.msra.mxu0 0
  %467 = vmatprep.subr.bf16.mxu0 0
  %468 = vmatpush2.bf16.msra.mxu0 0
  %469 = vmatprep.subr.bf16.mxu0 0
  %470 = vmatpush2.bf16.msra.mxu0 0
  %471 = vmatprep.mubr.bf16.mxu0 0
  %472 = vmatmul.mubr.bf16.gmra.mxu0 %v367
  %v473 = vpop.f32.mrf.mxu0
  %v474 = vadd.f32 %v389, %v473
  %v475 = vpop.f32.mrf.mxu0
  %v476 = vpop.f32.mrf.mxu0
  %v477 = vpop.f32.mrf.mxu0
  %478 = vdwg.mxu0
  %479 = vst [vmem:[%s9] sm:$0xff] %v474
  // Predicated region
  $region38: #{scalenet_forward.1} parent=0 // pred_check
    _
  $region39: #{scalenet_forward.1} parent=0 // pred_check_branch
    %481 = sbr.rel (0) target = $region41
  $region40: #{scalenet_forward.1} parent=0 // pred_region
    _
  $region41: #{scalenet_forward.1} parent=0 // pred_fallthru
    _
  // Predicated region
  $region42: #{scalenet_forward.1} parent=0 // pred_check
    _
  $region43: #{scalenet_forward.1} parent=0 // pred_check_branch
    %483 = sbr.rel (0) target = $region45
  $region44: #{scalenet_forward.1} parent=0 // pred_region
    _
  $region45: #{scalenet_forward.1} parent=0 // pred_fallthru
    _

</llo_original>
